<compile_context>
chip_gen: v6e
topology: v6e:2x2x1
jax: 0.10.0
libtpu: 0.0.40
codegen_flags: <defaults>
</compile_context>

<pallas_src>
import functools

import jax
import jax.numpy as jnp
from jax.experimental import pallas as pl
from jax.experimental.pallas import tpu as pltpu


# ----------------------------------------------------------------------------
# Fused kernel.  Grid = (B videos, T segments).  Per step = one frame:
#   im2col-matmul (BN scale pre-folded) -> +shift -> ReLU -> feature-sum accum.
# At the last segment of a video: mean over T*H*W -> fc head -> write one row.
# ----------------------------------------------------------------------------
def tsn_kernel(patch_ref, w_ref, bnb_ref, fcw_ref, fcb_ref, out_ref, feat_acc,
               *, inv_count):
    t = pl.program_id(1)

    @pl.when(t == 0)
    def _():
        feat_acc[...] = jnp.zeros_like(feat_acc)

    # Conv3x3 as a single im2col matmul on the MXU; BN scale is already folded
    # into w_ref, so only the per-channel shift remains, then ReLU.
    y = jnp.dot(patch_ref[...], w_ref[...],
                preferred_element_type=jnp.float32) + bnb_ref[...]
    y = jnp.maximum(y, 0.0)                                   # (H*W, Cf)

    # Global avg pool + avg consensus, expressed as a running sum over T*H*W.
    feat_acc[...] += jnp.sum(y, axis=0, keepdims=True)        # (1, Cf)

    @pl.when(t == pl.num_programs(1) - 1)
    def _():
        feat = feat_acc[...] * inv_count                      # mean over T*H*W
        logits = jnp.dot(feat, fcw_ref[...],
                         preferred_element_type=jnp.float32) + fcb_ref[...]
        out_ref[...] = logits.astype(out_ref.dtype)           # (1, NC_pad)


def tsn_forward(x_nchw, conv_w, bn_scale, bn_shift, fc_w, fc_b, *, num_segments):
    """x_nchw: (B, num_segments * 3, H, W) float32, PyTorch layout."""
    B, CT, H, W = x_nchw.shape
    T = num_segments
    Cin = CT // T
    Cf = conv_w.shape[3]
    NC = fc_w.shape[1]
    HW = H * W
    K = 9 * Cin                                   # im2col contraction (27 for RGB)
    Kp = 32 if K <= 32 else ((K + 127) // 128) * 128
    NCp = ((NC + 127) // 128) * 128               # lane-dense output head

    # ----- plain-JAX glue: frames, NCHW->NHWC, pad, im2col, weight folding -----
    frames = x_nchw.reshape(B * T, Cin, H, W).transpose(0, 2, 3, 1)   # (BT,H,W,Cin)
    xp = jnp.pad(frames, ((0, 0), (1, 1), (1, 1), (0, 0)))
    taps = [xp[:, dy:dy + H, dx:dx + W, :] for dy in range(3) for dx in range(3)]
    patches = jnp.concatenate(taps, axis=-1).reshape(B, T, HW, K)
    patches = jnp.pad(patches, ((0, 0), (0, 0), (0, 0), (0, Kp - K)))

    # Fold BN scale into the conv weights (per output channel); keep shift only.
    w2 = conv_w.reshape(K, Cf) * bn_scale.reshape(1, Cf)
    w2 = jnp.pad(w2, ((0, Kp - K), (0, 0)))
    bnb = bn_shift.reshape(1, Cf)

    # fc head padded to a lane-dense (128-multiple) class dim.
    fcw = jnp.pad(fc_w, ((0, 0), (0, NCp - NC)))
    fcb = jnp.pad(fc_b.reshape(1, NC), ((0, 0), (0, NCp - NC)))

    kernel = functools.partial(tsn_kernel, inv_count=1.0 / float(T * HW))

    out = pl.pallas_call(
        kernel,
        out_shape=jax.ShapeDtypeStruct((B, 1, NCp), jnp.float32),
        grid_spec=pltpu.PrefetchScalarGridSpec(
            num_scalar_prefetch=0,
            grid=(B, T),
            in_specs=[
                # one frame's lane-dense patch matrix per grid step
                pl.BlockSpec((None, None, HW, Kp), lambda b, t: (b, t, 0, 0)),
                pl.BlockSpec((Kp, Cf),  lambda b, t: (0, 0)),
                pl.BlockSpec((1, Cf),   lambda b, t: (0, 0)),
                pl.BlockSpec((Cf, NCp), lambda b, t: (0, 0)),
                pl.BlockSpec((1, NCp),  lambda b, t: (0, 0)),
            ],
            # per-video output block; written once at the last segment
            out_specs=pl.BlockSpec((None, 1, NCp), lambda b, t: (b, 0, 0)),
            scratch_shapes=[pltpu.VMEM((1, Cf), jnp.float32)],
        ),
        compiler_params=pltpu.CompilerParams(
            dimension_semantics=("parallel", "arbitrary")),
    )(patches, w2, bnb, fcw, fcb)

    return out[:, 0, :NC]


# ----------------------------------------------------------------------------
# Pure-JAX reference (unfused math) for verification.
# ----------------------------------------------------------------------------
def tsn_reference(x_nchw, conv_w, bn_scale, bn_shift, fc_w, fc_b, *, num_segments):
    B, CT, H, W = x_nchw.shape
    T = num_segments
    Cin = CT // T
    Cf = conv_w.shape[3]
    frames = x_nchw.reshape(B * T, Cin, H, W).transpose(0, 2, 3, 1)
    xp = jnp.pad(frames, ((0, 0), (1, 1), (1, 1), (0, 0)))
    acc = jnp.zeros((B * T, H, W, Cf), jnp.float32)
    for dy in range(3):
        for dx in range(3):
            patch = xp[:, dy:dy + H, dx:dx + W, :]
            acc = acc + jnp.einsum('nhwc,cf->nhwf', patch, conv_w[dy, dx])
    y = jnp.maximum(acc * bn_scale[0] + bn_shift[0], 0.0)
    feat = y.mean(axis=(1, 2))                                # (B*T, Cf)
    logits = feat @ fc_w + fc_b[0]                            # (B*T, NC)
    return logits.reshape(B, T, -1).mean(axis=1)              # (B, NC)


if __name__ == "__main__":
    # Small, module-consistent shapes: RGB modality, new_length=1 -> sample_len=3
    B = 2                 # videos per batch
    T = 8                 # num_segments
    H = W = 16            # spatial
    CIN = 3               # RGB
    CF = 128              # simplified backbone feature_dim
    NC = 16               # num_class

    key = jax.random.PRNGKey(0)
    kx, kw, kg, kb, km, kv, kfc = jax.random.split(key, 7)

    # Input in PyTorch TSN layout: (B, T * 3, H, W)
    x = jax.random.normal(kx, (B, T * CIN, H, W), jnp.float32)

    # Simplified base_model params (deterministic).
    conv_w = jax.random.normal(kw, (3, 3, CIN, CF), jnp.float32) * 0.1
    gamma = 1.0 + 0.1 * jax.random.normal(kg, (CF,), jnp.float32)
    beta = 0.1 * jax.random.normal(kb, (CF,), jnp.float32)
    run_mean = 0.1 * jax.random.normal(km, (CF,), jnp.float32)
    run_var = jnp.abs(jax.random.normal(kv, (CF,), jnp.float32)) + 1.0
    eps = 1e-5
    bn_scale = (gamma * jax.lax.rsqrt(run_var + eps)).reshape(1, CF)
    bn_shift = (beta - run_mean * gamma * jax.lax.rsqrt(run_var + eps)).reshape(1, CF)

    # new_fc: normal_(weight, 0, 0.001), constant_(bias, 0)  (as in _prepare_tsn)
    fc_w = 0.001 * jax.random.normal(kfc, (CF, NC), jnp.float32)
    fc_b = jnp.zeros((1, NC), jnp.float32)

    out = tsn_forward(x, conv_w, bn_scale, bn_shift, fc_w, fc_b, num_segments=T)
    out = jax.block_until_ready(out)

    ref = tsn_reference(x, conv_w, bn_scale, bn_shift, fc_w, fc_b, num_segments=T)
    assert out.shape == (B, NC), out.shape
    assert jnp.allclose(out, ref, atol=1e-4, rtol=1e-4), (
        float(jnp.max(jnp.abs(out - ref))))

    print("KERNEL_OK")
</pallas_src>

<mosaic_0001>
module attributes {stable_mosaic.version = 11 : i64} {
  func.func @tsn_kernel(%arg0: i32, %arg1: i32, %arg2: memref<1x1x256x32xf32, #tpu.memory_space<vmem>>, %arg3: memref<32x128xf32, #tpu.memory_space<vmem>>, %arg4: memref<1x128xf32, #tpu.memory_space<vmem>>, %arg5: memref<128x128xf32, #tpu.memory_space<vmem>>, %arg6: memref<1x128xf32, #tpu.memory_space<vmem>>, %arg7: memref<1x1x128xf32, #tpu.memory_space<vmem>>, %arg8: memref<1x128xf32, #tpu.memory_space<vmem>>) attributes {dimension_semantics = [#tpu.dimension_semantics<parallel>, #tpu.dimension_semantics<arbitrary>], iteration_bounds = array<i64: 2, 8>, scalar_prefetch = 0 : i64, scratch_operands = 1 : i64, tpu.core_type = #tpu.core_type<tc>, window_params = [{transform_indices = @transform_0, window_bounds = array<i64: 1, 1, 256, 32>}, {pipeline_mode = #tpu.pipeline_mode<synchronous>, transform_indices = @transform_1, window_bounds = array<i64: 32, 128>}, {pipeline_mode = #tpu.pipeline_mode<synchronous>, transform_indices = @transform_2, window_bounds = array<i64: 1, 128>}, {pipeline_mode = #tpu.pipeline_mode<synchronous>, transform_indices = @transform_3, window_bounds = array<i64: 128, 128>}, {pipeline_mode = #tpu.pipeline_mode<synchronous>, transform_indices = @transform_4, window_bounds = array<i64: 1, 128>}, {transform_indices = @transform_5, window_bounds = array<i64: 1, 1, 128>}]} {
    %c0_i32 = arith.constant 0 : i32
    %0 = arith.cmpi eq, %arg1, %c0_i32 : i32
    %1 = arith.extui %0 : i1 to i32
    %c0_i32_0 = arith.constant 0 : i32
    %2 = arith.cmpi ne, %1, %c0_i32_0 : i32
    scf.if %2 {
      %cst_15 = arith.constant 0.000000e+00 : f32
      %20 = vector.broadcast %cst_15 : f32 to vector<1x128xf32>
      %c0_16 = arith.constant 0 : index
      %c0_17 = arith.constant 0 : index
      %21 = vector.load %arg8[%c0_16, %c0_17] : memref<1x128xf32, #tpu.memory_space<vmem>>, vector<1x128xf32>
      tpu.vector_store %arg8[%c0_16, %c0_17], %20 {strides = array<i32>} : memref<1x128xf32, #tpu.memory_space<vmem>>, vector<1x128xf32>,
    } else {
    }
    %c0 = arith.constant 0 : index
    %c0_1 = arith.constant 0 : index
    %c0_2 = arith.constant 0 : index
    %c0_3 = arith.constant 0 : index
    %3 = vector.load %arg2[%c0, %c0_1, %c0_2, %c0_3] : memref<1x1x256x32xf32, #tpu.memory_space<vmem>>, vector<1x1x256x32xf32>
    %4 = vector.shape_cast %3 : vector<1x1x256x32xf32> to vector<256x32xf32>
    %c0_4 = arith.constant 0 : index
    %c0_5 = arith.constant 0 : index
    %5 = vector.load %arg3[%c0_4, %c0_5] : memref<32x128xf32, #tpu.memory_space<vmem>>, vector<32x128xf32>
    %cst = arith.constant dense<0.000000e+00> : vector<256x128xf32>
    %6 = tpu.matmul %4, %5, %cst {dimension_numbers = #tpu.dot_dimension_numbers<[1], [0], [0], [1], [0, 0, 1, 1], [], []>} : vector<256x32xf32>, vector<32x128xf32>, vector<256x128xf32> -> vector<256x128xf32>
    %c0_6 = arith.constant 0 : index
    %c0_7 = arith.constant 0 : index
    %7 = vector.load %arg4[%c0_6, %c0_7] : memref<1x128xf32, #tpu.memory_space<vmem>>, vector<1x128xf32>
    %8 = vector.broadcast %7 : vector<1x128xf32> to vector<256x128xf32>
    %9 = arith.addf %6, %8 : vector<256x128xf32>
    %cst_8 = arith.constant 0.000000e+00 : f32
    %10 = vector.broadcast %cst_8 : f32 to vector<256x128xf32>
    %11 = arith.maximumf %9, %10 : vector<256x128xf32>
    %c0_9 = arith.constant 0 : index
    %c0_10 = arith.constant 0 : index
    %12 = vector.load %arg8[%c0_9, %c0_10] : memref<1x128xf32, #tpu.memory_space<vmem>>, vector<1x128xf32>
    %cst_11 = arith.constant dense<0.000000e+00> : vector<128xf32>
    %13 = vector.multi_reduction <add>, %11, %cst_11 [0] : vector<256x128xf32> to vector<128xf32>
    %14 = vector.shape_cast %13 : vector<128xf32> to vector<1x128xf32>
    %15 = arith.addf %12, %14 : vector<1x128xf32>
    %c0_12 = arith.constant 0 : index
    %c0_13 = arith.constant 0 : index
    %16 = vector.load %arg8[%c0_12, %c0_13] : memref<1x128xf32, #tpu.memory_space<vmem>>, vector<1x128xf32>
    tpu.vector_store %arg8[%c0_12, %c0_13], %15 {strides = array<i32>} : memref<1x128xf32, #tpu.memory_space<vmem>>, vector<1x128xf32>,
    %c7_i32 = arith.constant 7 : i32
    %17 = arith.cmpi eq, %arg1, %c7_i32 : i32
    %18 = arith.extui %17 : i1 to i32
    %c0_i32_14 = arith.constant 0 : i32
    %19 = arith.cmpi ne, %18, %c0_i32_14 : i32
    scf.if %19 {
      %c0_15 = arith.constant 0 : index
      %c0_16 = arith.constant 0 : index
      %20 = vector.load %arg8[%c0_15, %c0_16] : memref<1x128xf32, #tpu.memory_space<vmem>>, vector<1x128xf32>
      %cst_17 = arith.constant 4.8828125E-4 : f32
      %21 = vector.broadcast %cst_17 : f32 to vector<1x128xf32>
      %22 = arith.mulf %20, %21 : vector<1x128xf32>
      %c0_18 = arith.constant 0 : index
      %c0_19 = arith.constant 0 : index
      %23 = vector.load %arg5[%c0_18, %c0_19] : memref<128x128xf32, #tpu.memory_space<vmem>>, vector<128x128xf32>
      %cst_20 = arith.constant dense<0.000000e+00> : vector<1x128xf32>
      %24 = tpu.matmul %22, %23, %cst_20 {dimension_numbers = #tpu.dot_dimension_numbers<[1], [0], [0], [1], [0, 0, 1, 1], [], []>} : vector<1x128xf32>, vector<128x128xf32>, vector<1x128xf32> -> vector<1x128xf32>
      %c0_21 = arith.constant 0 : index
      %c0_22 = arith.constant 0 : index
      %25 = vector.load %arg6[%c0_21, %c0_22] : memref<1x128xf32, #tpu.memory_space<vmem>>, vector<1x128xf32>
      %26 = arith.addf %24, %25 : vector<1x128xf32>
      %c0_23 = arith.constant 0 : index
      %c0_24 = arith.constant 0 : index
      %c0_25 = arith.constant 0 : index
      %27 = vector.load %arg7[%c0_23, %c0_24, %c0_25] : memref<1x1x128xf32, #tpu.memory_space<vmem>>, vector<1x1x128xf32>
      %28 = vector.shape_cast %27 : vector<1x1x128xf32> to vector<1x128xf32>
      %29 = vector.shape_cast %26 : vector<1x128xf32> to vector<1x1x128xf32>
      tpu.vector_store %arg7[%c0_23, %c0_24, %c0_25], %29 {strides = array<i32>} : memref<1x1x128xf32, #tpu.memory_space<vmem>>, vector<1x1x128xf32>,
    } else {
    }
    return
  }
  func.func @transform_0(%arg0: i32, %arg1: i32) -> (i32, i32, i32, i32) {
    %c0_i32 = arith.constant 0 : i32
    %c0_i32_0 = arith.constant 0 : i32
    %c0_i32_1 = arith.constant 0 : i32
    return %arg0, %arg1, %c0_i32, %c0_i32_0 : i32, i32, i32, i32
  }
  func.func @transform_1(%arg0: i32, %arg1: i32) -> (i32, i32) {
    %c0_i32 = arith.constant 0 : i32
    %c0_i32_0 = arith.constant 0 : i32
    %c0_i32_1 = arith.constant 0 : i32
    return %c0_i32, %c0_i32_0 : i32, i32
  }
  func.func @transform_2(%arg0: i32, %arg1: i32) -> (i32, i32) {
    %c0_i32 = arith.constant 0 : i32
    %c0_i32_0 = arith.constant 0 : i32
    %c0_i32_1 = arith.constant 0 : i32
    return %c0_i32, %c0_i32_0 : i32, i32
  }
  func.func @transform_3(%arg0: i32, %arg1: i32) -> (i32, i32) {
    %c0_i32 = arith.constant 0 : i32
    %c0_i32_0 = arith.constant 0 : i32
    %c0_i32_1 = arith.constant 0 : i32
    return %c0_i32, %c0_i32_0 : i32, i32
  }
  func.func @transform_4(%arg0: i32, %arg1: i32) -> (i32, i32) {
    %c0_i32 = arith.constant 0 : i32
    %c0_i32_0 = arith.constant 0 : i32
    %c0_i32_1 = arith.constant 0 : i32
    return %c0_i32, %c0_i32_0 : i32, i32
  }
  func.func @transform_5(%arg0: i32, %arg1: i32) -> (i32, i32, i32) {
    %c0_i32 = arith.constant 0 : i32
    %c0_i32_0 = arith.constant 0 : i32
    %c0_i32_1 = arith.constant 0 : i32
    return %arg0, %c0_i32, %c0_i32_0 : i32, i32, i32
  }
}

</mosaic_0001>

<llo_original>
// kernel: tpu_custom_call.1
$region0: #{tpu_custom_call.1}
  #allocation0 [shape = 'u32[]', space=smem, size = 0x4, offset = 0x4, fixed_abs, tag = 'smem constant byte address 0x4 - core index']
  #allocation1 [shape = 'u32[144,128]{1,0:T(1,128)}', space=vmem, size = 0x12000, scoped, tag = 'internal scratch']
  #allocation2 [shape = 'f32[1,128]{1,0:T(1,128)}', space=vmem, size = 0x200, scoped, tag = 'scratch operand']
  %s0 = inlined_call_operand.vmem [shape: f32[2,8,256,32], index: 0, kind: input, shape index: {}]
  %s1 = inlined_call_operand.vmem [shape: f32[32,128], index: 1, kind: input, shape index: {}]
  %s2 = inlined_call_operand.vmem [shape: f32[1,128], index: 2, kind: input, shape index: {}]
  %s3 = inlined_call_operand.vmem [shape: f32[128,128], index: 3, kind: input, shape index: {}]
  %s4 = inlined_call_operand.vmem [shape: f32[1,128], index: 4, kind: input, shape index: {}]
  %s5 = inlined_call_operand.hbm [shape: f32[2,1,128], index: 5, kind: output, shape index: {}]
  %s6 = sld [smem:[#allocation0]]
  $region61: #{tpu_custom_call.1} parent=0
    _
  %s8 = ssub.s32 1, %s6
  %s9 = scalar_select 0, %s8, %s6
  $region1: #{tpu_custom_call.1} parent=0
    #allocation3 [shape = 'u8[1024]{0}', space=vmem, size = 0x400, scoped, tag = 'output window, operand 0']
    #allocation4 [shape = 's32[2]{0}', space=sflag, size = 0x8, scoped, tag = 'scoped memory for tpu_custom_call.1']
    %10 = vsyncpa [#allocation4], 0
    %s11 = scalar_lea.sflag [#allocation4], 1
    %12 = vsyncpa %s11, 0
    loop: start=0, step=1, limit=18
    $region2: #{tpu_custom_call.1} parent=1 // loop_pre_header
      _
    $region3: #{tpu_custom_call.1} parent=1 // loop_header
      %s14 = sphi 0, %s18
      %p15 = scmp.ge.s32.totalorder %s14, 18
      %s21 = sphi 0, %s33
      %s22 = sphi 0, %s29
      %s23 = sphi 0, %s21
      %s24 = sphi 0, %s22
      %s25 = sphi 0, %s23
      %s26 = sphi 0, %s24
      %s38 = sphi 0, %s40
      %s41 = sphi 0, %s38
      %s42 = sphi 0, %s41
      %s58 = sphi 0, %s42
      %s62 = sphi 0, %s62
      %s64 = sphi 0, %s62
      %s65 = sphi 0, %s64
      %s79 = sphi 0, %s65
      %s83 = sphi 0, %s83
      %s85 = sphi 0, %s83
      %s86 = sphi 0, %s85
      %s100 = sphi 0, %s86
      %s104 = sphi 0, %s104
      %s106 = sphi 0, %s104
      %s107 = sphi 0, %s106
      %s121 = sphi 0, %s107
      %s125 = sphi 0, %s125
      %s127 = sphi 0, %s125
      %s128 = sphi 0, %s127
      %s142 = sphi 0, %s128
      %s148 = sphi 0, %s150
      %s151 = sphi 0, %s148
      %s152 = sphi 0, %s151
      %s168 = sphi 0, %s152
    $region4: #{tpu_custom_call.1} parent=1 // loop_header_branch
      %17 = sbr.rel (%p15) target = $region8
    $region5: #{tpu_custom_call.1} parent=1 // loop_body
      %s19 = ssub.s32 %s14, 1
      %s20 = ssub.s32 %s14, 2
      %s27 = sadd.s32 1, %s22
      %p28 = scmp.ge.s32.totalorder %s27, 8
      %s29 = scalar_select %p28, 0, %s27
      %s30 = sadd.s32 1, %s21
      %s31 = scalar_select %p28, %s30, %s21
      %p32 = scmp.ge.s32.totalorder %s31, 2
      %s33 = scalar_select %p32, 0, %s31
      %s34 = ssub.s32 %s21, %s33
      %s35 = ssub.s32 %s22, %s29
      %s36 = sor.u32 %s34, %s35
      %p37 = scmp.eq.s32.totalorder %s36, 0
      %s39 = sadd.s32 %s38, 1
      %s40 = scalar_select %p37, %s38, %s39
      %p43 = pneg %p37
      %p44 = scmp.eq.s32.totalorder %s14, 15
      %p45 = por %p43, %p44
      %p46 = scmp.ne.s32.totalorder %s38, %s41
      %p47 = scmp.eq.s32.totalorder %s14, 0
      %p48 = por %p46, %p47
      %p49 = scmp.ne.s32.totalorder %s38, %s41
      %p50 = scmp.eq.s32.totalorder %s19, 15
      %p51 = por %p49, %p50
      %p52 = scmp.ne.s32.totalorder %s41, %s42
      %p53 = scmp.eq.s32.totalorder %s19, 0
      %p54 = por %p52, %p53
      %p55 = scmp.ne.s32.totalorder %s41, %s42
      %p56 = scmp.eq.s32.totalorder %s20, 15
      %p57 = por %p55, %p56
      %p59 = scmp.ne.s32.totalorder %s42, %s58
      %p60 = scmp.eq.s32.totalorder %s20, 0
      %p61 = por %p59, %p60
      %s63 = sadd.s32 %s62, 1
      %p66 = scmp.eq.s32.totalorder %s14, 15
      %p67 = scmp.ne.s32.totalorder %s62, %s64
      %p68 = scmp.eq.s32.totalorder %s14, 0
      %p69 = por %p67, %p68
      %p70 = scmp.ne.s32.totalorder %s62, %s64
      %p71 = scmp.eq.s32.totalorder %s19, 15
      %p72 = por %p70, %p71
      %p73 = scmp.ne.s32.totalorder %s64, %s65
      %p74 = scmp.eq.s32.totalorder %s19, 0
      %p75 = por %p73, %p74
      %p76 = scmp.ne.s32.totalorder %s64, %s65
      %p77 = scmp.eq.s32.totalorder %s20, 15
      %p78 = por %p76, %p77
      %p80 = scmp.ne.s32.totalorder %s65, %s79
      %p81 = scmp.eq.s32.totalorder %s20, 0
      %p82 = por %p80, %p81
      %s84 = sadd.s32 %s83, 1
      %p87 = scmp.eq.s32.totalorder %s14, 15
      %p88 = scmp.ne.s32.totalorder %s83, %s85
      %p89 = scmp.eq.s32.totalorder %s14, 0
      %p90 = por %p88, %p89
      %p91 = scmp.ne.s32.totalorder %s83, %s85
      %p92 = scmp.eq.s32.totalorder %s19, 15
      %p93 = por %p91, %p92
      %p94 = scmp.ne.s32.totalorder %s85, %s86
      %p95 = scmp.eq.s32.totalorder %s19, 0
      %p96 = por %p94, %p95
      %p97 = scmp.ne.s32.totalorder %s85, %s86
      %p98 = scmp.eq.s32.totalorder %s20, 15
      %p99 = por %p97, %p98
      %p101 = scmp.ne.s32.totalorder %s86, %s100
      %p102 = scmp.eq.s32.totalorder %s20, 0
      %p103 = por %p101, %p102
      %s105 = sadd.s32 %s104, 1
      %p108 = scmp.eq.s32.totalorder %s14, 15
      %p109 = scmp.ne.s32.totalorder %s104, %s106
      %p110 = scmp.eq.s32.totalorder %s14, 0
      %p111 = por %p109, %p110
      %p112 = scmp.ne.s32.totalorder %s104, %s106
      %p113 = scmp.eq.s32.totalorder %s19, 15
      %p114 = por %p112, %p113
      %p115 = scmp.ne.s32.totalorder %s106, %s107
      %p116 = scmp.eq.s32.totalorder %s19, 0
      %p117 = por %p115, %p116
      %p118 = scmp.ne.s32.totalorder %s106, %s107
      %p119 = scmp.eq.s32.totalorder %s20, 15
      %p120 = por %p118, %p119
      %p122 = scmp.ne.s32.totalorder %s107, %s121
      %p123 = scmp.eq.s32.totalorder %s20, 0
      %p124 = por %p122, %p123
      %s126 = sadd.s32 %s125, 1
      %p129 = scmp.eq.s32.totalorder %s14, 15
      %p130 = scmp.ne.s32.totalorder %s125, %s127
      %p131 = scmp.eq.s32.totalorder %s14, 0
      %p132 = por %p130, %p131
      %p133 = scmp.ne.s32.totalorder %s125, %s127
      %p134 = scmp.eq.s32.totalorder %s19, 15
      %p135 = por %p133, %p134
      %p136 = scmp.ne.s32.totalorder %s127, %s128
      %p137 = scmp.eq.s32.totalorder %s19, 0
      %p138 = por %p136, %p137
      %p139 = scmp.ne.s32.totalorder %s127, %s128
      %p140 = scmp.eq.s32.totalorder %s20, 15
      %p141 = por %p139, %p140
      %p143 = scmp.ne.s32.totalorder %s128, %s142
      %p144 = scmp.eq.s32.totalorder %s20, 0
      %p145 = por %p143, %p144
      %s146 = ssub.s32 %s21, %s33
      %p147 = scmp.eq.s32.totalorder %s146, 0
      %s149 = sadd.s32 %s148, 1
      %s150 = scalar_select %p147, %s148, %s149
      %p153 = pneg %p147
      %p154 = scmp.eq.s32.totalorder %s14, 15
      %p155 = por %p153, %p154
      %p156 = scmp.ne.s32.totalorder %s148, %s151
      %p157 = scmp.eq.s32.totalorder %s14, 0
      %p158 = por %p156, %p157
      %p159 = scmp.ne.s32.totalorder %s148, %s151
      %p160 = scmp.eq.s32.totalorder %s19, 15
      %p161 = por %p159, %p160
      %p162 = scmp.ne.s32.totalorder %s151, %s152
      %p163 = scmp.eq.s32.totalorder %s19, 0
      %p164 = por %p162, %p163
      %p165 = scmp.ne.s32.totalorder %s151, %s152
      %p166 = scmp.eq.s32.totalorder %s20, 15
      %p167 = por %p165, %p166
      %p169 = scmp.ne.s32.totalorder %s152, %s168
      %p170 = scmp.eq.s32.totalorder %s20, 0
      %p171 = por %p169, %p170
      %p172 = scmp.le.s32.totalorder 1, %s14
      %p173 = scmp.lt.s32.totalorder %s14, 17
      %p174 = pnand %p172, %p173
      %p175 = pneg %p174
      // Predicated region
      $region9: #{tpu_custom_call.1} parent=5 // pred_check
        _
      $region10: #{tpu_custom_call.1} parent=5 // pred_check_branch
        %177 = sbr.rel (%p174) target = $region12
      $region11: #{tpu_custom_call.1} parent=5 // pred_region
        %s178 = ssub.s32 %s14, 1
        // Predicated region
        $region13: #{tpu_custom_call.1} parent=11 // pred_check
          %p179 = pneg %p75
        $region14: #{tpu_custom_call.1} parent=11 // pred_check_branch
          %181 = sbr.rel (%p179) target = $region16
        $region15: #{tpu_custom_call.1} parent=11 // pred_region
          _
        $region16: #{tpu_custom_call.1} parent=11 // pred_fallthru
          _
        // Predicated region
        $region17: #{tpu_custom_call.1} parent=11 // pred_check
          %p182 = pneg %p96
        $region18: #{tpu_custom_call.1} parent=11 // pred_check_branch
          %184 = sbr.rel (%p182) target = $region20
        $region19: #{tpu_custom_call.1} parent=11 // pred_region
          _
        $region20: #{tpu_custom_call.1} parent=11 // pred_fallthru
          _
        // Predicated region
        $region21: #{tpu_custom_call.1} parent=11 // pred_check
          %p185 = pneg %p117
        $region22: #{tpu_custom_call.1} parent=11 // pred_check_branch
          %187 = sbr.rel (%p185) target = $region24
        $region23: #{tpu_custom_call.1} parent=11 // pred_region
          _
        $region24: #{tpu_custom_call.1} parent=11 // pred_fallthru
          _
        // Predicated region
        $region25: #{tpu_custom_call.1} parent=11 // pred_check
          %p188 = pneg %p138
        $region26: #{tpu_custom_call.1} parent=11 // pred_check_branch
          %190 = sbr.rel (%p188) target = $region28
        $region27: #{tpu_custom_call.1} parent=11 // pred_region
          _
        $region28: #{tpu_custom_call.1} parent=11 // pred_fallthru
          _
      $region12: #{tpu_custom_call.1} parent=5 // pred_fallthru
        _
      %p191 = scmp.lt.s32.totalorder %s14, 16
      // Predicated region
      $region29: #{tpu_custom_call.1} parent=5 // pred_check
        %p192 = pneg %p191
      $region30: #{tpu_custom_call.1} parent=5 // pred_check_branch
        %194 = sbr.rel (%p192) target = $region32
      $region31: #{tpu_custom_call.1} parent=5 // pred_region
        // Predicated region
        $region33: #{tpu_custom_call.1} parent=31 // pred_check
          %p195 = pneg %p48
        $region34: #{tpu_custom_call.1} parent=31 // pred_check_branch
          %197 = sbr.rel (%p195) target = $region36
        $region35: #{tpu_custom_call.1} parent=31 // pred_region
          %p198 = scmp.lt.s32.totalorder %s21, 1
          %s199 = scalar_select %p198, %s21, 1
          %p200 = scmp.lt.s32.totalorder %s22, 7
          %s201 = scalar_select %p200, %s22, 7
          %s202 = smul.addr %s201, 32
          %s203 = smul.addr %s199, 256
          %s204 = sadd.s32 %s202, %s203
          %s205 = smul.addr %s204, 8
          %s206 = scalar_lea.vmem %s0, %s205
        $region36: #{tpu_custom_call.1} parent=31 // pred_fallthru
          _
      $region32: #{tpu_custom_call.1} parent=5 // pred_fallthru
        _
      %p207 = scmp.le.s32.totalorder 1, %s14
      %p208 = scmp.lt.s32.totalorder %s14, 17
      %p209 = pnand %p207, %p208
      %p210 = pneg %p209
      // Predicated region
      $region37: #{tpu_custom_call.1} parent=5 // pred_check
        _
      $region38: #{tpu_custom_call.1} parent=5 // pred_check_branch
        %212 = sbr.rel (%p209) target = $region40
      $region39: #{tpu_custom_call.1} parent=5 // pred_region
        %s213 = ssub.s32 %s14, 1
        %p214 = scmp.lt.s32.totalorder %s23, 1
        %s215 = scalar_select %p214, %s23, 1
        %p216 = scmp.lt.s32.totalorder %s24, 7
        %s217 = scalar_select %p216, %s24, 7
        %s218 = smul.addr %s217, 32
        %s219 = smul.addr %s215, 256
        %s220 = sadd.s32 %s218, %s219
        %s221 = smul.addr %s220, 8
        %s222 = scalar_lea.vmem %s0, %s221
        %p223 = pneg %p54
        %p224 = pneg %p51
        %p225 = pneg %p75
        %p226 = pneg %p72
        %p227 = pneg %p96
        %p228 = pneg %p93
        %p229 = pneg %p117
        %p230 = pneg %p114
        %p231 = pneg %p138
        %p232 = pneg %p135
        %p233 = pneg %p164
        %p234 = pneg %p161
        %s235 = sand.u32 %s151, 1
        %s236 = scalar_lea.sflag [#allocation4], %s235
        %s237 = sand.u32 %s151, 1
        %s238 = scalar_lea.vmem [#allocation3], %s237
        %p239 = scmp.lt.s32.totalorder %s23, 1
        %s240 = scalar_select %p239, %s23, 1
        %p241 = scmp.lt.s32.totalorder %s24, 7
        %s242 = scalar_select %p241, %s24, 7
        %s243 = smul.addr %s242, 32
        %s244 = smul.addr %s240, 256
        %s245 = sadd.s32 %s243, %s244
        %s246 = smul.addr %s245, 8
        %s247 = scalar_lea.vmem %s0, %s246
        %p248 = scmp.eq.s32.totalorder %s24, 0
        // Predicated region
        $region41: #{tpu_custom_call.1} parent=39 // pred_check
          %p249 = pneg %p248
        $region42: #{tpu_custom_call.1} parent=39 // pred_check_branch
          %251 = sbr.rel (%p249) target = $region44
        $region43: #{tpu_custom_call.1} parent=39 // pred_region
          %252 = vst [vmem:[#allocation2] sm:$0x1] 0.0
        $region44: #{tpu_custom_call.1} parent=39 // pred_fallthru
          _
        %v253 = vld [vmem:[%s247] sm:$0xff]
        %v254 = vld [vmem:[%s247 + $0x8] sm:$0xff]
        %v255 = vld [vmem:[%s247 + $0x10] sm:$0xff]
        %v256 = vld [vmem:[%s247 + $0x18] sm:$0xff]
        %v257 = vld [vmem:[%s247 + $0x20] sm:$0xff]
        %v258 = vld [vmem:[%s247 + $0x28] sm:$0xff]
        %v259 = vld [vmem:[%s247 + $0x30] sm:$0xff]
        %v260 = vld [vmem:[%s247 + $0x38] sm:$0xff]
        %v261 = vld [vmem:[%s247 + $0x40] sm:$0xff]
        %v262 = vld [vmem:[%s247 + $0x48] sm:$0xff]
        %v263 = vld [vmem:[%s247 + $0x50] sm:$0xff]
        %v264 = vld [vmem:[%s247 + $0x58] sm:$0xff]
        %v265 = vld [vmem:[%s247 + $0x60] sm:$0xff]
        %v266 = vld [vmem:[%s247 + $0x68] sm:$0xff]
        %v267 = vld [vmem:[%s247 + $0x70] sm:$0xff]
        %v268 = vld [vmem:[%s247 + $0x78] sm:$0xff]
        %v269 = vld [vmem:[%s247 + $0x80] sm:$0xff]
        %v270 = vld [vmem:[%s247 + $0x88] sm:$0xff]
        %v271 = vld [vmem:[%s247 + $0x90] sm:$0xff]
        %v272 = vld [vmem:[%s247 + $0x98] sm:$0xff]
        %v273 = vld [vmem:[%s247 + $0xa0] sm:$0xff]
        %v274 = vld [vmem:[%s247 + $0xa8] sm:$0xff]
        %v275 = vld [vmem:[%s247 + $0xb0] sm:$0xff]
        %v276 = vld [vmem:[%s247 + $0xb8] sm:$0xff]
        %v277 = vld [vmem:[%s247 + $0xc0] sm:$0xff]
        %v278 = vld [vmem:[%s247 + $0xc8] sm:$0xff]
        %v279 = vld [vmem:[%s247 + $0xd0] sm:$0xff]
        %v280 = vld [vmem:[%s247 + $0xd8] sm:$0xff]
        %v281 = vld [vmem:[%s247 + $0xe0] sm:$0xff]
        %v282 = vld [vmem:[%s247 + $0xe8] sm:$0xff]
        %v283 = vld [vmem:[%s247 + $0xf0] sm:$0xff]
        %v284 = vld [vmem:[%s247 + $0xf8] sm:$0xff]
        %v285 = vld [vmem:[%s1] sm:$0xff]
        %v286 = vld [vmem:[%s1 + $0x8] sm:$0xff]
        %v287 = vld [vmem:[%s1 + $0x10] sm:$0xff]
        %v288 = vld [vmem:[%s1 + $0x18] sm:$0xff]
        %v289 = vld [vmem:[%s2] sm:$0x1]
        %v291 = vlaneseq
        %v292 = vshrl.u32 %v291, 7
        %v293 = vsub.s32 0, %v292
        %v294 = vrot.slane %v289, %v293
        %vm296 = vcmask 261120
        %v298 = vsel %vm296, %v253, 0
        %v301 = vsel %vm296, %v254, 0
        %v304 = vsel %vm296, %v255, 0
        %v307 = vsel %vm296, %v256, 0
        %v310 = vsel %vm296, %v257, 0
        %v313 = vsel %vm296, %v258, 0
        %v316 = vsel %vm296, %v259, 0
        %v319 = vsel %vm296, %v260, 0
        %v322 = vsel %vm296, %v261, 0
        %v325 = vsel %vm296, %v262, 0
        %v328 = vsel %vm296, %v263, 0
        %v331 = vsel %vm296, %v264, 0
        %v334 = vsel %vm296, %v265, 0
        %v337 = vsel %vm296, %v266, 0
        %v340 = vsel %vm296, %v267, 0
        %v343 = vsel %vm296, %v268, 0
        %v346 = vsel %vm296, %v269, 0
        %v349 = vsel %vm296, %v270, 0
        %v352 = vsel %vm296, %v271, 0
        %v355 = vsel %vm296, %v272, 0
        %v358 = vsel %vm296, %v273, 0
        %v361 = vsel %vm296, %v274, 0
        %v364 = vsel %vm296, %v275, 0
        %v367 = vsel %vm296, %v276, 0
        %v370 = vsel %vm296, %v277, 0
        %v373 = vsel %vm296, %v278, 0
        %v376 = vsel %vm296, %v279, 0
        %v379 = vsel %vm296, %v280, 0
        %v382 = vsel %vm296, %v281, 0
        %v385 = vsel %vm296, %v282, 0
        %v388 = vsel %vm296, %v283, 0
        %v391 = vsel %vm296, %v284, 0
        %393 = vmatprep.subr.mxu0 0.0
        %394 = vmatpush1.msra.mxu0 0.0
        %395 = vmatprep.subr.mxu0 0.0
        %396 = vmatpush1.msra.mxu0 0.0
        %397 = vmatprep.subr.mxu0 0.0
        %398 = vmatpush1.msra.mxu0 0.0
        %399 = vmatprep.subr.mxu0 0.0
        %400 = vmatpush1.msra.mxu0 0.0
        %401 = vmatprep.subr.mxu0 0.0
        %402 = vmatpush1.msra.mxu0 0.0
        %403 = vmatprep.subr.mxu0 0.0
        %404 = vmatpush1.msra.mxu0 0.0
        %405 = vmatprep.subr.mxu0 0.0
        %406 = vmatpush1.msra.mxu0 0.0
        %407 = vmatprep.subr.mxu0 0.0
        %408 = vmatpush1.msra.mxu0 0.0
        %409 = vmatprep.subr.mxu0 0.0
        %410 = vmatpush1.msra.mxu0 0.0
        %411 = vmatprep.subr.mxu0 0.0
        %412 = vmatpush1.msra.mxu0 0.0
        %413 = vmatprep.subr.mxu0 0.0
        %414 = vmatpush1.msra.mxu0 0.0
        %415 = vmatprep.subr.mxu0 0.0
        %416 = vmatpush1.msra.mxu0 0.0
        %417 = vmatprep.subr.mxu0 0.0
        %418 = vmatpush1.msra.mxu0 %v288
        %419 = vmatprep.subr.mxu0 0.0
        %420 = vmatpush1.msra.mxu0 %v287
        %421 = vmatprep.subr.mxu0 0.0
        %422 = vmatpush1.msra.mxu0 %v286
        %423 = vmatprep.subr.mxu0 0.0
        %424 = vmatpush1.msra.mxu0 %v285
        %425 = vmatprep.subr.mxu0 0.0
        %426 = vmatpush2.msra.mxu0 0.0
        %427 = vmatprep.subr.mxu0 0.0
        %428 = vmatpush2.msra.mxu0 0.0
        %429 = vmatprep.subr.mxu0 0.0
        %430 = vmatpush2.msra.mxu0 0.0
        %431 = vmatprep.subr.mxu0 0.0
        %432 = vmatpush2.msra.mxu0 0.0
        %433 = vmatprep.subr.mxu0 0.0
        %434 = vmatpush2.msra.mxu0 0.0
        %435 = vmatprep.subr.mxu0 0.0
        %436 = vmatpush2.msra.mxu0 0.0
        %437 = vmatprep.subr.mxu0 0.0
        %438 = vmatpush2.msra.mxu0 0.0
        %439 = vmatprep.subr.mxu0 0.0
        %440 = vmatpush2.msra.mxu0 0.0
        %441 = vmatprep.subr.mxu0 0.0
        %442 = vmatpush2.msra.mxu0 0.0
        %443 = vmatprep.subr.mxu0 0.0
        %444 = vmatpush2.msra.mxu0 0.0
        %445 = vmatprep.subr.mxu0 0.0
        %446 = vmatpush2.msra.mxu0 0.0
        %447 = vmatprep.subr.mxu0 0.0
        %448 = vmatpush2.msra.mxu0 0.0
        %449 = vmatprep.subr.mxu0 0.0
        %450 = vmatpush2.msra.mxu0 0.0
        %451 = vmatprep.subr.mxu0 0.0
        %452 = vmatpush2.msra.mxu0 0.0
        %453 = vmatprep.subr.mxu0 0.0
        %454 = vmatpush2.msra.mxu0 0.0
        %455 = vmatprep.subr.mxu0 0.0
        %456 = vmatpush2.msra.mxu0 0.0
        %457 = vmatprep.mubr.f32.mxu0 0.0
        %458 = vmatmul.mubr.f32.gmra.mxu0 %v298
        %v459 = vpop.f32.mrf.mxu0
        %v460 = vadd.f32 %v294, %v459
        %v461 = vpop.f32.mrf.mxu0
        %462 = vmatprep.mubr.f32.mxu0 0.0
        %463 = vmatmul.mubr.f32.gmra.mxu0 %v301
        %v464 = vpop.f32.mrf.mxu0
        %v465 = vadd.f32 %v294, %v464
        %v466 = vpop.f32.mrf.mxu0
        %467 = vmatprep.mubr.f32.mxu0 0.0
        %468 = vmatmul.mubr.f32.gmra.mxu0 %v304
        %v469 = vpop.f32.mrf.mxu0
        %v470 = vadd.f32 %v294, %v469
        %v471 = vpop.f32.mrf.mxu0
        %472 = vmatprep.mubr.f32.mxu0 0.0
        %473 = vmatmul.mubr.f32.gmra.mxu0 %v307
        %v474 = vpop.f32.mrf.mxu0
        %v475 = vadd.f32 %v294, %v474
        %v476 = vpop.f32.mrf.mxu0
        %477 = vmatprep.mubr.f32.mxu0 0.0
        %478 = vmatmul.mubr.f32.gmra.mxu0 %v310
        %v479 = vpop.f32.mrf.mxu0
        %v480 = vadd.f32 %v294, %v479
        %v481 = vpop.f32.mrf.mxu0
        %482 = vmatprep.mubr.f32.mxu0 0.0
        %483 = vmatmul.mubr.f32.gmra.mxu0 %v313
        %v484 = vpop.f32.mrf.mxu0
        %v485 = vadd.f32 %v294, %v484
        %v486 = vpop.f32.mrf.mxu0
        %487 = vmatprep.mubr.f32.mxu0 0.0
        %488 = vmatmul.mubr.f32.gmra.mxu0 %v316
        %v489 = vpop.f32.mrf.mxu0
        %v490 = vadd.f32 %v294, %v489
        %v491 = vpop.f32.mrf.mxu0
        %492 = vmatprep.mubr.f32.mxu0 0.0
        %493 = vmatmul.mubr.f32.gmra.mxu0 %v319
        %v494 = vpop.f32.mrf.mxu0
        %v495 = vadd.f32 %v294, %v494
        %v496 = vpop.f32.mrf.mxu0
        %497 = vmatprep.mubr.f32.mxu0 0.0
        %498 = vmatmul.mubr.f32.gmra.mxu0 %v322
        %v499 = vpop.f32.mrf.mxu0
        %v500 = vadd.f32 %v294, %v499
        %v501 = vpop.f32.mrf.mxu0
        %502 = vmatprep.mubr.f32.mxu0 0.0
        %503 = vmatmul.mubr.f32.gmra.mxu0 %v325
        %v504 = vpop.f32.mrf.mxu0
        %v505 = vadd.f32 %v294, %v504
        %v506 = vpop.f32.mrf.mxu0
        %507 = vmatprep.mubr.f32.mxu0 0.0
        %508 = vmatmul.mubr.f32.gmra.mxu0 %v328
        %v509 = vpop.f32.mrf.mxu0
        %v510 = vadd.f32 %v294, %v509
        %v511 = vpop.f32.mrf.mxu0
        %512 = vmatprep.mubr.f32.mxu0 0.0
        %513 = vmatmul.mubr.f32.gmra.mxu0 %v331
        %v514 = vpop.f32.mrf.mxu0
        %v515 = vadd.f32 %v294, %v514
        %v516 = vpop.f32.mrf.mxu0
        %517 = vmatprep.mubr.f32.mxu0 0.0
        %518 = vmatmul.mubr.f32.gmra.mxu0 %v334
        %v519 = vpop.f32.mrf.mxu0
        %v520 = vadd.f32 %v294, %v519
        %v521 = vpop.f32.mrf.mxu0
        %522 = vmatprep.mubr.f32.mxu0 0.0
        %523 = vmatmul.mubr.f32.gmra.mxu0 %v337
        %v524 = vpop.f32.mrf.mxu0
        %v525 = vadd.f32 %v294, %v524
        %v526 = vpop.f32.mrf.mxu0
        %527 = vmatprep.mubr.f32.mxu0 0.0
        %528 = vmatmul.mubr.f32.gmra.mxu0 %v340
        %v529 = vpop.f32.mrf.mxu0
        %v530 = vadd.f32 %v294, %v529
        %v531 = vpop.f32.mrf.mxu0
        %532 = vmatprep.mubr.f32.mxu0 0.0
        %533 = vmatmul.mubr.f32.gmra.mxu0 %v343
        %v534 = vpop.f32.mrf.mxu0
        %v535 = vadd.f32 %v294, %v534
        %v536 = vpop.f32.mrf.mxu0
        %537 = vmatprep.mubr.f32.mxu0 0.0
        %538 = vmatmul.mubr.f32.gmra.mxu0 %v346
        %v539 = vpop.f32.mrf.mxu0
        %v540 = vadd.f32 %v294, %v539
        %v541 = vpop.f32.mrf.mxu0
        %542 = vmatprep.mubr.f32.mxu0 0.0
        %543 = vmatmul.mubr.f32.gmra.mxu0 %v349
        %v544 = vpop.f32.mrf.mxu0
        %v545 = vadd.f32 %v294, %v544
        %v546 = vpop.f32.mrf.mxu0
        %547 = vmatprep.mubr.f32.mxu0 0.0
        %548 = vmatmul.mubr.f32.gmra.mxu0 %v352
        %v549 = vpop.f32.mrf.mxu0
        %v550 = vadd.f32 %v294, %v549
        %v551 = vpop.f32.mrf.mxu0
        %552 = vmatprep.mubr.f32.mxu0 0.0
        %553 = vmatmul.mubr.f32.gmra.mxu0 %v355
        %v554 = vpop.f32.mrf.mxu0
        %v555 = vadd.f32 %v294, %v554
        %v556 = vpop.f32.mrf.mxu0
        %557 = vmatprep.mubr.f32.mxu0 0.0
        %558 = vmatmul.mubr.f32.gmra.mxu0 %v358
        %v559 = vpop.f32.mrf.mxu0
        %v560 = vadd.f32 %v294, %v559
        %v561 = vpop.f32.mrf.mxu0
        %562 = vmatprep.mubr.f32.mxu0 0.0
        %563 = vmatmul.mubr.f32.gmra.mxu0 %v361
        %v564 = vpop.f32.mrf.mxu0
        %v565 = vadd.f32 %v294, %v564
        %v566 = vpop.f32.mrf.mxu0
        %567 = vmatprep.mubr.f32.mxu0 0.0
        %568 = vmatmul.mubr.f32.gmra.mxu0 %v364
        %v569 = vpop.f32.mrf.mxu0
        %v570 = vadd.f32 %v294, %v569
        %v571 = vpop.f32.mrf.mxu0
        %572 = vmatprep.mubr.f32.mxu0 0.0
        %573 = vmatmul.mubr.f32.gmra.mxu0 %v367
        %v574 = vpop.f32.mrf.mxu0
        %v575 = vadd.f32 %v294, %v574
        %v576 = vpop.f32.mrf.mxu0
        %577 = vmatprep.mubr.f32.mxu0 0.0
        %578 = vmatmul.mubr.f32.gmra.mxu0 %v370
        %v579 = vpop.f32.mrf.mxu0
        %v580 = vadd.f32 %v294, %v579
        %v581 = vpop.f32.mrf.mxu0
        %582 = vmatprep.mubr.f32.mxu0 0.0
        %583 = vmatmul.mubr.f32.gmra.mxu0 %v373
        %v584 = vpop.f32.mrf.mxu0
        %v585 = vadd.f32 %v294, %v584
        %v586 = vpop.f32.mrf.mxu0
        %587 = vmatprep.mubr.f32.mxu0 0.0
        %588 = vmatmul.mubr.f32.gmra.mxu0 %v376
        %v589 = vpop.f32.mrf.mxu0
        %v590 = vadd.f32 %v294, %v589
        %v591 = vpop.f32.mrf.mxu0
        %592 = vmatprep.mubr.f32.mxu0 0.0
        %593 = vmatmul.mubr.f32.gmra.mxu0 %v379
        %v594 = vpop.f32.mrf.mxu0
        %v595 = vadd.f32 %v294, %v594
        %v596 = vpop.f32.mrf.mxu0
        %597 = vmatprep.mubr.f32.mxu0 0.0
        %598 = vmatmul.mubr.f32.gmra.mxu0 %v382
        %v599 = vpop.f32.mrf.mxu0
        %v600 = vadd.f32 %v294, %v599
        %v601 = vpop.f32.mrf.mxu0
        %602 = vmatprep.mubr.f32.mxu0 0.0
        %603 = vmatmul.mubr.f32.gmra.mxu0 %v385
        %v604 = vpop.f32.mrf.mxu0
        %v605 = vadd.f32 %v294, %v604
        %v606 = vpop.f32.mrf.mxu0
        %607 = vmatprep.mubr.f32.mxu0 0.0
        %608 = vmatmul.mubr.f32.gmra.mxu0 %v388
        %v609 = vpop.f32.mrf.mxu0
        %v610 = vadd.f32 %v294, %v609
        %v611 = vpop.f32.mrf.mxu0
        %612 = vmatprep.mubr.f32.mxu0 0.0
        %613 = vmatmul.mubr.f32.gmra.mxu0 %v391
        %v614 = vpop.f32.mrf.mxu0
        %v615 = vadd.f32 %v294, %v614
        %v616 = vpop.f32.mrf.mxu0
        %617 = vdwg.mxu0
        %v618 = vmax.f32 %v460, 0.0
        %v619 = vmax.f32 %v465, 0.0
        %v620 = vmax.f32 %v470, 0.0
        %v621 = vmax.f32 %v475, 0.0
        %v622 = vmax.f32 %v480, 0.0
        %v623 = vmax.f32 %v485, 0.0
        %v624 = vmax.f32 %v490, 0.0
        %v625 = vmax.f32 %v495, 0.0
        %v626 = vmax.f32 %v500, 0.0
        %v627 = vmax.f32 %v505, 0.0
        %v628 = vmax.f32 %v510, 0.0
        %v629 = vmax.f32 %v515, 0.0
        %v630 = vmax.f32 %v520, 0.0
        %v631 = vmax.f32 %v525, 0.0
        %v632 = vmax.f32 %v530, 0.0
        %v633 = vmax.f32 %v535, 0.0
        %v634 = vmax.f32 %v540, 0.0
        %v635 = vmax.f32 %v545, 0.0
        %v636 = vmax.f32 %v550, 0.0
        %v637 = vmax.f32 %v555, 0.0
        %v638 = vmax.f32 %v560, 0.0
        %v639 = vmax.f32 %v565, 0.0
        %v640 = vmax.f32 %v570, 0.0
        %v641 = vmax.f32 %v575, 0.0
        %v642 = vmax.f32 %v580, 0.0
        %v643 = vmax.f32 %v585, 0.0
        %v644 = vmax.f32 %v590, 0.0
        %v645 = vmax.f32 %v595, 0.0
        %v646 = vmax.f32 %v600, 0.0
        %v647 = vmax.f32 %v605, 0.0
        %v648 = vmax.f32 %v610, 0.0
        %v649 = vmax.f32 %v615, 0.0
        %v650 = vld [vmem:[#allocation2] sm:$0x1]
        %v651 = vadd.f32 %v618, %v619
        %v652 = vadd.f32 %v651, %v620
        %v653 = vadd.f32 %v652, %v621
        %v654 = vadd.f32 %v653, %v622
        %v655 = vadd.f32 %v654, %v623
        %v656 = vadd.f32 %v655, %v624
        %v657 = vadd.f32 %v656, %v625
        %v658 = vadd.f32 %v657, %v626
        %v659 = vadd.f32 %v658, %v627
        %v660 = vadd.f32 %v659, %v628
        %v661 = vadd.f32 %v660, %v629
        %v662 = vadd.f32 %v661, %v630
        %v663 = vadd.f32 %v662, %v631
        %v664 = vadd.f32 %v663, %v632
        %v665 = vadd.f32 %v664, %v633
        %v666 = vadd.f32 %v665, %v634
        %v667 = vadd.f32 %v666, %v635
        %v668 = vadd.f32 %v667, %v636
        %v669 = vadd.f32 %v668, %v637
        %v670 = vadd.f32 %v669, %v638
        %v671 = vadd.f32 %v670, %v639
        %v672 = vadd.f32 %v671, %v640
        %v673 = vadd.f32 %v672, %v641
        %v674 = vadd.f32 %v673, %v642
        %v675 = vadd.f32 %v674, %v643
        %v676 = vadd.f32 %v675, %v644
        %v677 = vadd.f32 %v676, %v645
        %v678 = vadd.f32 %v677, %v646
        %v679 = vadd.f32 %v678, %v647
        %v680 = vadd.f32 %v679, %v648
        %v681 = vadd.f32 %v680, %v649
        %v682 = vrot.slane %v681, 4
        %v683 = vadd.f32 %v681, %v682
        %v684 = vrot.slane %v683, 2
        %v685 = vadd.f32 %v683, %v684
        %v686 = vrot.slane %v685, 1
        %v687 = vadd.f32 %v685, %v686
        %v688 = vadd.f32 %v650, %v687
        %689 = vst [vmem:[#allocation2] sm:$0x1] %v688
        %p690 = scmp.eq.s32.totalorder %s24, 7
        // Predicated region
        $region45: #{tpu_custom_call.1} parent=39 // pred_check
          %p691 = pneg %p690
        $region46: #{tpu_custom_call.1} parent=39 // pred_check_branch
          %693 = sbr.rel (%p691) target = $region48
        $region47: #{tpu_custom_call.1} parent=39 // pred_region
          %v694 = vld [vmem:[#allocation2] sm:$0x1]
          %v695 = vmul.f32 %v694, 0.00048828125
          %v696 = vld [vmem:[%s3] sm:$0xff]
          %v697 = vld [vmem:[%s3 + $0x8] sm:$0xff]
          %v698 = vld [vmem:[%s3 + $0x10] sm:$0xff]
          %v699 = vld [vmem:[%s3 + $0x18] sm:$0xff]
          %v700 = vld [vmem:[%s3 + $0x20] sm:$0xff]
          %v701 = vld [vmem:[%s3 + $0x28] sm:$0xff]
          %v702 = vld [vmem:[%s3 + $0x30] sm:$0xff]
          %v703 = vld [vmem:[%s3 + $0x38] sm:$0xff]
          %v704 = vld [vmem:[%s3 + $0x40] sm:$0xff]
          %v705 = vld [vmem:[%s3 + $0x48] sm:$0xff]
          %v706 = vld [vmem:[%s3 + $0x50] sm:$0xff]
          %v707 = vld [vmem:[%s3 + $0x58] sm:$0xff]
          %v708 = vld [vmem:[%s3 + $0x60] sm:$0xff]
          %v709 = vld [vmem:[%s3 + $0x68] sm:$0xff]
          %v710 = vld [vmem:[%s3 + $0x70] sm:$0xff]
          %v711 = vld [vmem:[%s3 + $0x78] sm:$0xff]
          %v712 = vld [vmem:[%s4] sm:$0x1]
          %713 = vmatprep.subr.mxu0 0.0
          %714 = vmatpush1.msra.mxu0 %v711
          %715 = vmatprep.subr.mxu0 0.0
          %716 = vmatpush1.msra.mxu0 %v710
          %717 = vmatprep.subr.mxu0 0.0
          %718 = vmatpush1.msra.mxu0 %v709
          %719 = vmatprep.subr.mxu0 0.0
          %720 = vmatpush1.msra.mxu0 %v708
          %721 = vmatprep.subr.mxu0 0.0
          %722 = vmatpush1.msra.mxu0 %v707
          %723 = vmatprep.subr.mxu0 0.0
          %724 = vmatpush1.msra.mxu0 %v706
          %725 = vmatprep.subr.mxu0 0.0
          %726 = vmatpush1.msra.mxu0 %v705
          %727 = vmatprep.subr.mxu0 0.0
          %728 = vmatpush1.msra.mxu0 %v704
          %729 = vmatprep.subr.mxu0 0.0
          %730 = vmatpush1.msra.mxu0 %v703
          %731 = vmatprep.subr.mxu0 0.0
          %732 = vmatpush1.msra.mxu0 %v702
          %733 = vmatprep.subr.mxu0 0.0
          %734 = vmatpush1.msra.mxu0 %v701
          %735 = vmatprep.subr.mxu0 0.0
          %736 = vmatpush1.msra.mxu0 %v700
          %737 = vmatprep.subr.mxu0 0.0
          %738 = vmatpush1.msra.mxu0 %v699
          %739 = vmatprep.subr.mxu0 0.0
          %740 = vmatpush1.msra.mxu0 %v698
          %741 = vmatprep.subr.mxu0 0.0
          %742 = vmatpush1.msra.mxu0 %v697
          %743 = vmatprep.subr.mxu0 0.0
          %744 = vmatpush1.msra.mxu0 %v696
          %745 = vmatprep.subr.mxu0 0.0
          %746 = vmatpush2.msra.mxu0 0.0
          %747 = vmatprep.subr.mxu0 0.0
          %748 = vmatpush2.msra.mxu0 0.0
          %749 = vmatprep.subr.mxu0 0.0
          %750 = vmatpush2.msra.mxu0 0.0
          %751 = vmatprep.subr.mxu0 0.0
          %752 = vmatpush2.msra.mxu0 0.0
          %753 = vmatprep.subr.mxu0 0.0
          %754 = vmatpush2.msra.mxu0 0.0
          %755 = vmatprep.subr.mxu0 0.0
          %756 = vmatpush2.msra.mxu0 0.0
          %757 = vmatprep.subr.mxu0 0.0
          %758 = vmatpush2.msra.mxu0 0.0
          %759 = vmatprep.subr.mxu0 0.0
          %760 = vmatpush2.msra.mxu0 0.0
          %761 = vmatprep.subr.mxu0 0.0
          %762 = vmatpush2.msra.mxu0 0.0
          %763 = vmatprep.subr.mxu0 0.0
          %764 = vmatpush2.msra.mxu0 0.0
          %765 = vmatprep.subr.mxu0 0.0
          %766 = vmatpush2.msra.mxu0 0.0
          %767 = vmatprep.subr.mxu0 0.0
          %768 = vmatpush2.msra.mxu0 0.0
          %769 = vmatprep.subr.mxu0 0.0
          %770 = vmatpush2.msra.mxu0 0.0
          %771 = vmatprep.subr.mxu0 0.0
          %772 = vmatpush2.msra.mxu0 0.0
          %773 = vmatprep.subr.mxu0 0.0
          %774 = vmatpush2.msra.mxu0 0.0
          %775 = vmatprep.subr.mxu0 0.0
          %776 = vmatpush2.msra.mxu0 0.0
          %777 = vmatprep.mubr.f32.mxu0 0.0
          %778 = vmatmul.mubr.f32.gmra.mxu0 %v695
          %v779 = vpop.f32.mrf.mxu0
          %v780 = vadd.f32 %v712, %v779
          %v781 = vpop.f32.mrf.mxu0
          %782 = vdwg.mxu0
          %783 = vst [vmem:[%s238] sm:$0x1] %v780
        $region48: #{tpu_custom_call.1} parent=39 // pred_fallthru
          _
        %s784 = sand.u32 %s151, 1
        %s785 = scalar_lea.sflag [#allocation4], %s784
        %s786 = sand.u32 %s151, 1
        %s787 = scalar_lea.vmem [#allocation3], %s786
        // Predicated region
        $region49: #{tpu_custom_call.1} parent=39 // pred_check
          %p788 = pneg %p161
        $region50: #{tpu_custom_call.1} parent=39 // pred_check_branch
          %790 = sbr.rel (%p788) target = $region52
        $region51: #{tpu_custom_call.1} parent=39 // pred_region
          %s792 = ssub.s32 16, 16
          %793 = vsyncadd %s785, %s792
          %s794 = smul.addr %s23, 16
          %s795 = scalar_lea.hbm %s5, %s794
          %s797 = sshll.u32 %s787, 4
          %s798 = int_to_ptr.vmem [resolvable:$true] %s797
          %800 = dma.vmem_to_hbm [thread:$0]  %s798, 16, %s795, %s785
        $region52: #{tpu_custom_call.1} parent=39 // pred_fallthru
          _
      $region40: #{tpu_custom_call.1} parent=5 // pred_fallthru
        _
      %p801 = scmp.le.s32.totalorder 2, %s14
      // Predicated region
      $region53: #{tpu_custom_call.1} parent=5 // pred_check
        %p802 = pneg %p801
      $region54: #{tpu_custom_call.1} parent=5 // pred_check_branch
        %804 = sbr.rel (%p802) target = $region56
      $region55: #{tpu_custom_call.1} parent=5 // pred_region
        %s805 = ssub.s32 %s14, 2
        // Predicated region
        $region57: #{tpu_custom_call.1} parent=55 // pred_check
          %p806 = pneg %p167
        $region58: #{tpu_custom_call.1} parent=55 // pred_check_branch
          %808 = sbr.rel (%p806) target = $region60
        $region59: #{tpu_custom_call.1} parent=55 // pred_region
          %s809 = sand.u32 %s152, 1
          %s810 = scalar_lea.sflag [#allocation4], %s809
          %s811 = sand.u32 %s152, 1
          %s812 = scalar_lea.vmem [#allocation3], %s811
          %813 = dma.done %s810, 16
        $region60: #{tpu_custom_call.1} parent=55 // pred_fallthru
          _
      $region56: #{tpu_custom_call.1} parent=5 // pred_fallthru
        _
    $region6: #{tpu_custom_call.1} parent=1 // loop_footer
      %s18 = sadd.s32 1, %s14
    $region7: #{tpu_custom_call.1} parent=1 // loop_footer_branch
      %13 = sbr.rel target = $region3
    $region8: #{tpu_custom_call.1} parent=1 // loop_exit
      _
    %814 = vsyncpa [#allocation4], 1
    %s815 = scalar_lea.sflag [#allocation4], 1
    %816 = vsyncpa %s815, 1

</llo_original>
